<compile_context>
chip_gen: v6e
topology: v6e:2x2x1
jax: 0.10.0
libtpu: 0.0.40
codegen_flags: <defaults>
</compile_context>

<pallas_src>
import math

import jax
import jax.numpy as jnp
from jax.experimental import pallas as pl
from jax.experimental.pallas import tpu as pltpu


def _round_up(v, m):
    return ((v + m - 1) // m) * m


def _pick_tile(dim, desired, unit=128):
    """Largest tile <= desired that is a multiple of `unit` and divides `dim`.

    `dim` is always padded to a multiple of `unit` by prepare_lora_params, so
    this never falls back to an oversized full-extent block."""
    cand = max(unit, (min(desired, dim) // unit) * unit)
    while cand > unit and dim % cand != 0:
        cand -= unit
    return cand


def _vmem_budget_bytes():
    """Generation-aware scoped-VMEM limit (~65% of physical capacity)."""
    cap = 64 * 1024 * 1024  # conservative default (v7x per-TC VMEM)
    try:
        info = pltpu.get_tpu_info()
        cap = getattr(info, "vmem_capacity_bytes", cap) or cap
    except Exception:
        pass
    return min(int(0.65 * cap), 100 * 1024 * 1024)


def prepare_lora_params(w, b, lora_A, lora_B, scalings, *, param_dtype=jnp.bfloat16):
    """One-time weight preparation (hoisted out of the per-call hot path).

    w: [N, K], b: [N], lora_A: [T, r, K], lora_B: [T, N, r], scalings: len T.
    Returns bf16 W^T / A_cat^T / scaled-B_cat padded to 128-multiples, f32 bias.
    """
    w = jnp.asarray(w, jnp.float32)
    b = jnp.asarray(b, jnp.float32)
    lora_A = jnp.asarray(lora_A, jnp.float32)   # [T, r, K]
    lora_B = jnp.asarray(lora_B, jnp.float32)   # [T, N, r]
    N, K = w.shape
    T, r, _ = lora_A.shape
    Tr = T * r
    K_pad = _round_up(K, 128)
    N_pad = _round_up(N, 128)
    Tr_pad = _round_up(Tr, 128)                 # lane-dense low-rank axis

    wt = jnp.zeros((K_pad, N_pad), param_dtype).at[:K, :N].set(
        w.T.astype(param_dtype))                                    # [K_pad, N_pad]
    b2 = jnp.zeros((1, N_pad), jnp.float32).at[:, :N].set(b.reshape(1, N))
    # A_cat stored pre-transposed -> no XLU transpose in the kernel.
    a_kt = jnp.zeros((K_pad, Tr_pad), param_dtype).at[:K, :Tr].set(
        lora_A.reshape(Tr, K).T.astype(param_dtype))                # [K_pad, Tr_pad]
    # Per-task scaling folded into B_cat (no per-task VPU scaled adds).
    s = jnp.asarray(scalings, jnp.float32).reshape(T, 1, 1)
    b_scaled = (jnp.transpose(lora_B, (0, 2, 1)) * s).reshape(Tr, N)
    b_cat = jnp.zeros((Tr_pad, N_pad), param_dtype).at[:Tr, :N].set(
        b_scaled.astype(param_dtype))                               # [Tr_pad, N_pad]

    return dict(wt=wt, b2=b2, a_kt=a_kt, b_cat=b_cat,
                K=K, N=N, K_pad=K_pad, N_pad=N_pad, Tr_pad=Tr_pad)


def lora_linear_forward(x, params, *, tm_desired=512, tn_desired=512,
                        tk_desired=1024):
    """x: [..., K] (any float dtype). Returns [..., N] in x.dtype."""
    wt, b2, a_kt, b_cat = params["wt"], params["b2"], params["a_kt"], params["b_cat"]
    K, N = params["K"], params["N"]
    K_pad, N_pad, Tr_pad = params["K_pad"], params["N_pad"], params["Tr_pad"]

    compute_dtype = wt.dtype
    w_bpe = jnp.dtype(compute_dtype).itemsize
    out_dtype = x.dtype                         # result.to(previous_dtype)
    out_bpe = jnp.dtype(out_dtype).itemsize

    orig_shape = x.shape
    x2 = x.reshape(-1, K).astype(compute_dtype)
    M = x2.shape[0]

    # ---- tile selection -----------------------------------------------------
    sub = 16 if w_bpe == 2 else 8               # bf16 packs 16 rows per vreg
    # Balanced M tiling: minimal padding for awkward M (e.g. M=300 -> tm=304).
    n_mtiles = max(1, math.ceil(M / tm_desired))
    tm = _round_up(math.ceil(M / n_mtiles), sub)
    tn = _pick_tile(N_pad, tn_desired)
    tk = _pick_tile(K_pad, tk_desired)

    vmem_limit = _vmem_budget_bytes()

    def _est(tm_, tn_, tk_):
        return (2 * tm_ * tk_ * w_bpe            # x tile (double buffered)
                + 2 * tk_ * tn_ * w_bpe          # W^T tile
                + 2 * Tr_pad * tn_ * w_bpe       # scaled B_cat tile
                + 2 * tn_ * 4                    # bias tile (f32)
                + 2 * K_pad * Tr_pad * w_bpe     # resident A_cat^T
                + 2 * tm_ * tn_ * out_bpe        # output tile
                + tm_ * tn_ * 4                  # f32 base accumulator
                + tm_ * Tr_pad * 4)              # f32 low-rank accumulator

    budget = int(0.75 * vmem_limit)
    # TODO(synk): if the resident A_cat^T alone exceeds the budget (huge K and
    # many tasks), fall back to a per-k blocked A_cat instead of shrinking.
    while _est(tm, tn, tk) > budget:
        if tk > 128:
            tk = _pick_tile(K_pad, tk - 128)
        elif tn > 128:
            tn = _pick_tile(N_pad, tn - 128)
        elif tm > sub:
            tm = max(sub, _round_up(tm // 2, sub))
        else:
            break

    M_pad = _round_up(M, tm)
    if M_pad != M or K_pad != K:
        x2 = jnp.pad(x2, ((0, M_pad - M), (0, K_pad - K)))

    # ---- grid order ----------------------------------------------------------
    # Note: both orders stream x N_pad/tn times and W^T M_pad/tm times total;
    # large tm/tn is what reduces re-streaming.  We still order the two
    # parallel axes so the larger operand sits on the outer axis.
    x_is_smaller = (M_pad * K_pad) <= (K_pad * N_pad)
    if x_is_smaller:
        grid = (M_pad // tm, N_pad // tn, K_pad // tk)
        x_map = lambda a, b, k: (a, k)
        w_map = lambda a, b, k: (k, b)
        n_map = lambda a, b, k: (0, b)
        o_map = lambda a, b, k: (a, b)
    else:
        grid = (N_pad // tn, M_pad // tm, K_pad // tk)
        x_map = lambda a, b, k: (b, k)
        w_map = lambda a, b, k: (k, a)
        n_map = lambda a, b, k: (0, a)
        o_map = lambda a, b, k: (b, a)
    a_map = lambda a, b, k: (0, 0)              # A_cat^T stays resident in VMEM

    def kernel(x_ref, wt_ref, b_ref, a_ref, bs_ref, o_ref, acc_ref, z_ref):
        k = pl.program_id(2)

        @pl.when(k == 0)
        def _():
            acc_ref[...] = jnp.zeros_like(acc_ref)
            z_ref[...] = jnp.zeros_like(z_ref)

        xv = x_ref[...]
        # Base path: partial x @ W^T for this K tile (bf16 MXU, f32 acc).
        acc_ref[...] += jnp.dot(xv, wt_ref[...],
                                preferred_element_type=jnp.float32)
        # Fused LoRA stage 1: z += x @ A_cat^T.  A_cat^T is fully resident;
        # slice the K rows for this step (no per-step DMA, no XLU transpose).
        a_blk = a_ref[pl.ds(pl.multiple_of(k * tk, 128), tk), :]
        z_ref[...] += jnp.dot(xv, a_blk, preferred_element_type=jnp.float32)

        @pl.when(k == pl.num_programs(2) - 1)
        def _():
            # Stage 2, once per output tile: (tm, Tr_pad) @ (Tr_pad, tn).
            # Upcast the small scaled-B tile instead of rounding the f32 z.
            lora = jnp.dot(z_ref[...], bs_ref[...].astype(jnp.float32),
                           preferred_element_type=jnp.float32)
            out = acc_ref[...] + lora + b_ref[...]
            o_ref[...] = out.astype(o_ref.dtype)

    out = pl.pallas_call(
        kernel,
        out_shape=jax.ShapeDtypeStruct((M_pad, N_pad), out_dtype),
        grid_spec=pltpu.PrefetchScalarGridSpec(
            num_scalar_prefetch=0,
            grid=grid,
            in_specs=[
                pl.BlockSpec((tm, tk), x_map),          # x            (bf16)
                pl.BlockSpec((tk, tn), w_map),          # W^T          (bf16)
                pl.BlockSpec((1, tn), n_map),           # bias         (f32)
                pl.BlockSpec((K_pad, Tr_pad), a_map),   # A_cat^T, VMEM-resident
                pl.BlockSpec((Tr_pad, tn), n_map),      # scaled B_cat (bf16)
            ],
            out_specs=pl.BlockSpec((tm, tn), o_map),
            scratch_shapes=[
                pltpu.VMEM((tm, tn), jnp.float32),      # base-path accumulator
                pltpu.VMEM((tm, Tr_pad), jnp.float32),  # low-rank accumulator
            ],
        ),
        compiler_params=pltpu.CompilerParams(
            dimension_semantics=("parallel", "parallel", "arbitrary"),
            vmem_limit_bytes=vmem_limit,
        ),
    )(x2, wt, b2, a_kt, b_cat)

    out = out[:M, :N]
    return out.reshape(*orig_shape[:-1], N)


def _xavier_normal(key, shape):
    fan_out, fan_in = shape
    std = (2.0 / (fan_in + fan_out)) ** 0.5
    return std * jax.random.normal(key, shape, dtype=jnp.float32)


if __name__ == "__main__":
    # Small shapes consistent with the module.
    batch, seq = 2, 8
    in_features, out_features = 32, 32
    r = 8
    lora_alpha = 16
    T = 2                              # two active adapter tasks
    scaling = lora_alpha / r
    scalings = [scaling] * T

    key = jax.random.PRNGKey(0)
    keys = jax.random.split(key, 2 + 2 * T + 1)

    # Base nn.Linear(in_features, out_features) parameters.
    w = _xavier_normal(keys[0], (out_features, in_features))
    b = 0.01 * jax.random.normal(keys[1], (out_features,), dtype=jnp.float32)

    # Per-task LoRA parameters (xavier_normal_, as in update_layer).
    lora_A = jnp.stack(
        [_xavier_normal(keys[2 + 2 * t], (r, in_features)) for t in range(T)]
    )  # [T, r, K]
    lora_B = jnp.stack(
        [_xavier_normal(keys[3 + 2 * t], (out_features, r)) for t in range(T)]
    )  # [T, N, r]

    x = jax.random.normal(keys[-1], (batch, seq, in_features), dtype=jnp.float32)

    # One-time weight prep (analogous to storing W^T / fused, scaled adapters).
    params = prepare_lora_params(w, b, lora_A, lora_B, scalings)

    out = lora_linear_forward(x, params)
    out = jax.block_until_ready(out)

    # Pure-JAX reference with the same bf16 operand rounding (f32 accumulation).
    xb = x.astype(jnp.bfloat16).astype(jnp.float32)
    wb = w.astype(jnp.bfloat16).astype(jnp.float32)
    ref = jnp.einsum("bsk,nk->bsn", xb, wb) + b
    for t in range(T):
        ab = lora_A[t].astype(jnp.bfloat16).astype(jnp.float32)
        bb = (scalings[t] * lora_B[t]).astype(jnp.bfloat16).astype(jnp.float32)
        z = jnp.einsum("bsk,rk->bsr", xb, ab)
        ref = ref + jnp.einsum("bsr,nr->bsn", z, bb)

    assert out.shape == (batch, seq, out_features)
    assert out.dtype == x.dtype
    max_err = float(jnp.max(jnp.abs(out - ref)))
    assert jnp.allclose(out, ref, atol=2e-3, rtol=2e-3), f"mismatch vs reference ({max_err})"
    print("KERNEL_OK")
</pallas_src>

<mosaic_0001>
module attributes {stable_mosaic.version = 11 : i64} {
  func.func @kernel(%arg0: i32, %arg1: i32, %arg2: i32, %arg3: memref<16x128xbf16, #tpu.memory_space<vmem>>, %arg4: memref<128x128xbf16, #tpu.memory_space<vmem>>, %arg5: memref<1x128xf32, #tpu.memory_space<vmem>>, %arg6: memref<128x128xbf16, #tpu.memory_space<vmem>>, %arg7: memref<128x128xbf16, #tpu.memory_space<vmem>>, %arg8: memref<16x128xf32, #tpu.memory_space<vmem>>, %arg9: memref<16x128xf32, #tpu.memory_space<vmem>>, %arg10: memref<16x128xf32, #tpu.memory_space<vmem>>) attributes {dimension_semantics = [#tpu.dimension_semantics<parallel>, #tpu.dimension_semantics<parallel>, #tpu.dimension_semantics<arbitrary>], iteration_bounds = array<i64: 1, 1, 1>, scalar_prefetch = 0 : i64, scratch_operands = 2 : i64, tpu.core_type = #tpu.core_type<tc>, window_params = [{transform_indices = @transform_0, window_bounds = array<i64: 16, 128>}, {transform_indices = @transform_1, window_bounds = array<i64: 128, 128>}, {transform_indices = @transform_2, window_bounds = array<i64: 1, 128>}, {pipeline_mode = #tpu.pipeline_mode<synchronous>, transform_indices = @transform_3, window_bounds = array<i64: 128, 128>}, {transform_indices = @transform_4, window_bounds = array<i64: 128, 128>}, {transform_indices = @transform_5, window_bounds = array<i64: 16, 128>}]} {
    %c0_i32 = arith.constant 0 : i32
    %0 = arith.cmpi eq, %arg2, %c0_i32 : i32
    %1 = arith.extui %0 : i1 to i32
    %c0_i32_0 = arith.constant 0 : i32
    %2 = arith.cmpi ne, %1, %c0_i32_0 : i32
    scf.if %2 {
      %cst_16 = arith.constant 0.000000e+00 : f32
      %20 = vector.broadcast %cst_16 : f32 to vector<16x128xf32>
      %c0_17 = arith.constant 0 : index
      %c0_18 = arith.constant 0 : index
      %21 = vector.load %arg9[%c0_17, %c0_18] : memref<16x128xf32, #tpu.memory_space<vmem>>, vector<16x128xf32>
      tpu.vector_store %arg9[%c0_17, %c0_18], %20 {strides = array<i32>} : memref<16x128xf32, #tpu.memory_space<vmem>>, vector<16x128xf32>,
      %cst_19 = arith.constant 0.000000e+00 : f32
      %22 = vector.broadcast %cst_19 : f32 to vector<16x128xf32>
      %c0_20 = arith.constant 0 : index
      %c0_21 = arith.constant 0 : index
      %23 = vector.load %arg10[%c0_20, %c0_21] : memref<16x128xf32, #tpu.memory_space<vmem>>, vector<16x128xf32>
      tpu.vector_store %arg10[%c0_20, %c0_21], %22 {strides = array<i32>} : memref<16x128xf32, #tpu.memory_space<vmem>>, vector<16x128xf32>,
    } else {
    }
    %c0 = arith.constant 0 : index
    %c0_1 = arith.constant 0 : index
    %3 = vector.load %arg3[%c0, %c0_1] : memref<16x128xbf16, #tpu.memory_space<vmem>>, vector<16x128xbf16>
    %c0_2 = arith.constant 0 : index
    %c0_3 = arith.constant 0 : index
    %4 = vector.load %arg9[%c0_2, %c0_3] : memref<16x128xf32, #tpu.memory_space<vmem>>, vector<16x128xf32>
    %c0_4 = arith.constant 0 : index
    %c0_5 = arith.constant 0 : index
    %5 = vector.load %arg4[%c0_4, %c0_5] : memref<128x128xbf16, #tpu.memory_space<vmem>>, vector<128x128xbf16>
    %cst = arith.constant dense<0.000000e+00> : vector<16x128xf32>
    %6 = tpu.matmul %3, %5, %cst {dimension_numbers = #tpu.dot_dimension_numbers<[1], [0], [0], [1], [0, 0, 1, 1], [], []>} : vector<16x128xbf16>, vector<128x128xbf16>, vector<16x128xf32> -> vector<16x128xf32>
    %7 = arith.addf %4, %6 : vector<16x128xf32>
    %c0_6 = arith.constant 0 : index
    %c0_7 = arith.constant 0 : index
    %8 = vector.load %arg9[%c0_6, %c0_7] : memref<16x128xf32, #tpu.memory_space<vmem>>, vector<16x128xf32>
    tpu.vector_store %arg9[%c0_6, %c0_7], %7 {strides = array<i32>} : memref<16x128xf32, #tpu.memory_space<vmem>>, vector<16x128xf32>,
    %c128_i32 = arith.constant 128 : i32
    %9 = arith.muli %arg2, %c128_i32 : i32
    %10 = tpu.assume_multiple %9, 128 : i32
    %11 = arith.index_cast %10 : i32 to index
    %c0_8 = arith.constant 0 : index
    %12 = vector.load %arg6[%11, %c0_8] : memref<128x128xbf16, #tpu.memory_space<vmem>>, vector<128x128xbf16>
    %c0_9 = arith.constant 0 : index
    %c0_10 = arith.constant 0 : index
    %13 = vector.load %arg10[%c0_9, %c0_10] : memref<16x128xf32, #tpu.memory_space<vmem>>, vector<16x128xf32>
    %cst_11 = arith.constant dense<0.000000e+00> : vector<16x128xf32>
    %14 = tpu.matmul %3, %12, %cst_11 {dimension_numbers = #tpu.dot_dimension_numbers<[1], [0], [0], [1], [0, 0, 1, 1], [], []>} : vector<16x128xbf16>, vector<128x128xbf16>, vector<16x128xf32> -> vector<16x128xf32>
    %15 = arith.addf %13, %14 : vector<16x128xf32>
    %c0_12 = arith.constant 0 : index
    %c0_13 = arith.constant 0 : index
    %16 = vector.load %arg10[%c0_12, %c0_13] : memref<16x128xf32, #tpu.memory_space<vmem>>, vector<16x128xf32>
    tpu.vector_store %arg10[%c0_12, %c0_13], %15 {strides = array<i32>} : memref<16x128xf32, #tpu.memory_space<vmem>>, vector<16x128xf32>,
    %c0_i32_14 = arith.constant 0 : i32
    %17 = arith.cmpi eq, %arg2, %c0_i32_14 : i32
    %18 = arith.extui %17 : i1 to i32
    %c0_i32_15 = arith.constant 0 : i32
    %19 = arith.cmpi ne, %18, %c0_i32_15 : i32
    scf.if %19 {
      %c0_16 = arith.constant 0 : index
      %c0_17 = arith.constant 0 : index
      %20 = vector.load %arg10[%c0_16, %c0_17] : memref<16x128xf32, #tpu.memory_space<vmem>>, vector<16x128xf32>
      %c0_18 = arith.constant 0 : index
      %c0_19 = arith.constant 0 : index
      %21 = vector.load %arg7[%c0_18, %c0_19] : memref<128x128xbf16, #tpu.memory_space<vmem>>, vector<128x128xbf16>
      %22 = arith.extf %21 : vector<128x128xbf16> to vector<128x128xf32>
      %cst_20 = arith.constant dense<0.000000e+00> : vector<16x128xf32>
      %23 = tpu.matmul %20, %22, %cst_20 {dimension_numbers = #tpu.dot_dimension_numbers<[1], [0], [0], [1], [0, 0, 1, 1], [], []>} : vector<16x128xf32>, vector<128x128xf32>, vector<16x128xf32> -> vector<16x128xf32>
      %c0_21 = arith.constant 0 : index
      %c0_22 = arith.constant 0 : index
      %24 = vector.load %arg9[%c0_21, %c0_22] : memref<16x128xf32, #tpu.memory_space<vmem>>, vector<16x128xf32>
      %25 = arith.addf %24, %23 : vector<16x128xf32>
      %c0_23 = arith.constant 0 : index
      %c0_24 = arith.constant 0 : index
      %26 = vector.load %arg5[%c0_23, %c0_24] : memref<1x128xf32, #tpu.memory_space<vmem>>, vector<1x128xf32>
      %27 = vector.broadcast %26 : vector<1x128xf32> to vector<16x128xf32>
      %28 = arith.addf %25, %27 : vector<16x128xf32>
      %c0_25 = arith.constant 0 : index
      %c0_26 = arith.constant 0 : index
      %29 = vector.load %arg8[%c0_25, %c0_26] : memref<16x128xf32, #tpu.memory_space<vmem>>, vector<16x128xf32>
      tpu.vector_store %arg8[%c0_25, %c0_26], %28 {strides = array<i32>} : memref<16x128xf32, #tpu.memory_space<vmem>>, vector<16x128xf32>,
    } else {
    }
    return
  }
  func.func @transform_0(%arg0: i32, %arg1: i32, %arg2: i32) -> (i32, i32) {
    %c0_i32 = arith.constant 0 : i32
    return %arg0, %arg2 : i32, i32
  }
  func.func @transform_1(%arg0: i32, %arg1: i32, %arg2: i32) -> (i32, i32) {
    %c0_i32 = arith.constant 0 : i32
    return %arg2, %arg1 : i32, i32
  }
  func.func @transform_2(%arg0: i32, %arg1: i32, %arg2: i32) -> (i32, i32) {
    %c0_i32 = arith.constant 0 : i32
    %c0_i32_0 = arith.constant 0 : i32
    return %c0_i32, %arg1 : i32, i32
  }
  func.func @transform_3(%arg0: i32, %arg1: i32, %arg2: i32) -> (i32, i32) {
    %c0_i32 = arith.constant 0 : i32
    %c0_i32_0 = arith.constant 0 : i32
    %c0_i32_1 = arith.constant 0 : i32
    return %c0_i32, %c0_i32_0 : i32, i32
  }
  func.func @transform_4(%arg0: i32, %arg1: i32, %arg2: i32) -> (i32, i32) {
    %c0_i32 = arith.constant 0 : i32
    %c0_i32_0 = arith.constant 0 : i32
    return %c0_i32, %arg1 : i32, i32
  }
  func.func @transform_5(%arg0: i32, %arg1: i32, %arg2: i32) -> (i32, i32) {
    %c0_i32 = arith.constant 0 : i32
    return %arg0, %arg1 : i32, i32
  }
}

</mosaic_0001>

<llo_original>
// kernel: tpu_custom_call.1
$region0: #{tpu_custom_call.1}
  #allocation0 [shape = 'u32[]', space=smem, size = 0x4, offset = 0x4, fixed_abs, tag = 'smem constant byte address 0x4 - core index']
  #allocation1 [shape = 'u32[144,128]{1,0:T(1,128)}', space=vmem, size = 0x12000, scoped, tag = 'internal scratch']
  #allocation2 [shape = 'f32[16,128]{1,0:T(8,128)}', space=vmem, size = 0x2000, scoped, tag = 'scratch operand']
  #allocation3 [shape = 'f32[16,128]{1,0:T(8,128)}', space=vmem, size = 0x2000, scoped, tag = 'scratch operand']
  %s0 = inlined_call_operand.hbm [shape: bf16[16,128], index: 0, kind: input, shape index: {}]
  %s1 = inlined_call_operand.hbm [shape: bf16[128,128], index: 1, kind: input, shape index: {}]
  %s2 = inlined_call_operand.vmem [shape: f32[1,128], index: 2, kind: input, shape index: {}]
  %s3 = inlined_call_operand.hbm [shape: bf16[128,128], index: 3, kind: input, shape index: {}]
  %s4 = inlined_call_operand.hbm [shape: bf16[128,128], index: 4, kind: input, shape index: {}]
  %s5 = inlined_call_operand.hbm [shape: f32[16,128], index: 5, kind: output, shape index: {}]
  %s6 = sld [smem:[#allocation0]]
  $region54: #{tpu_custom_call.1} parent=0
    _
  %s8 = ssub.s32 1, %s6
  %s9 = scalar_select 0, %s8, %s6
  $region1: #{tpu_custom_call.1} parent=0
    #allocation4 [shape = 'u8[4096]{0}', space=vmem, size = 0x1000, scoped, tag = 'input window, operand 0, single buffered']
    #allocation5 [shape = 's32[1]{0}', space=sflag, size = 0x4, scoped, tag = 'scoped memory for tpu_custom_call.1']
    #allocation6 [shape = 's32[1]{0}', space=sflag, size = 0x4, scoped, tag = 'scoped memory for tpu_custom_call.1']
    #allocation7 [shape = 'u8[32768]{0}', space=vmem, size = 0x8000, scoped, tag = 'input window, operand 1, single buffered']
    #allocation8 [shape = 's32[1]{0}', space=sflag, size = 0x4, scoped, tag = 'scoped memory for tpu_custom_call.1']
    #allocation9 [shape = 'u8[32768]{0}', space=vmem, size = 0x8000, scoped, tag = 'input window, operand 3, single buffered']
    #allocation10 [shape = 'u8[32768]{0}', space=vmem, size = 0x8000, scoped, tag = 'input window, operand 4, single buffered']
    #allocation11 [shape = 's32[1]{0}', space=sflag, size = 0x4, scoped, tag = 'scoped memory for tpu_custom_call.1']
    #allocation12 [shape = 'u8[8192]{0}', space=vmem, size = 0x2000, scoped, tag = 'output window, operand 0, single buffered']
    %10 = vsyncpa [#allocation5], 0
    %11 = vsyncpa [#allocation8], 0
    %12 = vsyncpa [#allocation11], 0
    %13 = vsyncpa [#allocation6], 0
    // Predicated region
    $region2: #{tpu_custom_call.1} parent=1 // pred_check
      _
    $region3: #{tpu_custom_call.1} parent=1 // pred_check_branch
      %15 = sbr.rel (0) target = $region5
    $region4: #{tpu_custom_call.1} parent=1 // pred_region
      %s17 = ssub.s32 128, 128
      %18 = vsyncadd [#allocation5], %s17
      %s19 = sshll.u32 [#allocation4], 4
      %s20 = int_to_ptr.vmem [resolvable:$true] %s19
      %25 = dma.hbm_to_vmem [thread:$0]  %s0, 128, %s20, [#allocation5], 64, 64, 4
    $region5: #{tpu_custom_call.1} parent=1 // pred_fallthru
      _
    // Predicated region
    $region6: #{tpu_custom_call.1} parent=1 // pred_check
      _
    $region7: #{tpu_custom_call.1} parent=1 // pred_check_branch
      %27 = sbr.rel (0) target = $region9
    $region8: #{tpu_custom_call.1} parent=1 // pred_region
      %s29 = ssub.s32 1024, 1024
      %30 = vsyncadd [#allocation8], %s29
      %s31 = sshll.u32 [#allocation7], 4
      %s32 = int_to_ptr.vmem [resolvable:$true] %s31
      %37 = dma.hbm_to_vmem [thread:$0]  %s1, 1024, %s32, [#allocation8], 64, 64, 4
    $region9: #{tpu_custom_call.1} parent=1 // pred_fallthru
      _
    // Predicated region
    $region10: #{tpu_custom_call.1} parent=1 // pred_check
      _
    $region11: #{tpu_custom_call.1} parent=1 // pred_check_branch
      %39 = sbr.rel (0) target = $region13
    $region12: #{tpu_custom_call.1} parent=1 // pred_region
      _
    $region13: #{tpu_custom_call.1} parent=1 // pred_fallthru
      _
    // Predicated region
    $region14: #{tpu_custom_call.1} parent=1 // pred_check
      _
    $region15: #{tpu_custom_call.1} parent=1 // pred_check_branch
      %41 = sbr.rel (0) target = $region17
    $region16: #{tpu_custom_call.1} parent=1 // pred_region
      %s43 = ssub.s32 1024, 1024
      %44 = vsyncadd [#allocation8], %s43
      %s45 = sshll.u32 [#allocation9], 4
      %s46 = int_to_ptr.vmem [resolvable:$true] %s45
      %51 = dma.hbm_to_vmem [thread:$0]  %s3, 1024, %s46, [#allocation8], 64, 64, 4
    $region17: #{tpu_custom_call.1} parent=1 // pred_fallthru
      _
    // Predicated region
    $region18: #{tpu_custom_call.1} parent=1 // pred_check
      _
    $region19: #{tpu_custom_call.1} parent=1 // pred_check_branch
      %53 = sbr.rel (0) target = $region21
    $region20: #{tpu_custom_call.1} parent=1 // pred_region
      %s55 = ssub.s32 1024, 1024
      %56 = vsyncadd [#allocation11], %s55
      %s57 = sshll.u32 [#allocation10], 4
      %s58 = int_to_ptr.vmem [resolvable:$true] %s57
      %63 = dma.hbm_to_vmem [thread:$0]  %s4, 1024, %s58, [#allocation11], 64, 64, 4
    $region21: #{tpu_custom_call.1} parent=1 // pred_fallthru
      _
    // Predicated region
    $region22: #{tpu_custom_call.1} parent=1 // pred_check
      _
    $region23: #{tpu_custom_call.1} parent=1 // pred_check_branch
      %65 = sbr.rel (0) target = $region25
    $region24: #{tpu_custom_call.1} parent=1 // pred_region
      %66 = dma.done [#allocation5], 128
    $region25: #{tpu_custom_call.1} parent=1 // pred_fallthru
      _
    // Predicated region
    $region26: #{tpu_custom_call.1} parent=1 // pred_check
      _
    $region27: #{tpu_custom_call.1} parent=1 // pred_check_branch
      %68 = sbr.rel (0) target = $region29
    $region28: #{tpu_custom_call.1} parent=1 // pred_region
      %69 = dma.done [#allocation8], 1024
    $region29: #{tpu_custom_call.1} parent=1 // pred_fallthru
      _
    // Predicated region
    $region30: #{tpu_custom_call.1} parent=1 // pred_check
      _
    $region31: #{tpu_custom_call.1} parent=1 // pred_check_branch
      %71 = sbr.rel (0) target = $region33
    $region32: #{tpu_custom_call.1} parent=1 // pred_region
      %72 = dma.done [#allocation8], 1024
    $region33: #{tpu_custom_call.1} parent=1 // pred_fallthru
      _
    // Predicated region
    $region34: #{tpu_custom_call.1} parent=1 // pred_check
      _
    $region35: #{tpu_custom_call.1} parent=1 // pred_check_branch
      %74 = sbr.rel (0) target = $region37
    $region36: #{tpu_custom_call.1} parent=1 // pred_region
      %75 = dma.done [#allocation11], 1024
    $region37: #{tpu_custom_call.1} parent=1 // pred_fallthru
      _
    %p77 = scmp.eq.s32.totalorder 0, 0
    // Predicated region
    $region38: #{tpu_custom_call.1} parent=1 // pred_check
      %p78 = pneg %p77
    $region39: #{tpu_custom_call.1} parent=1 // pred_check_branch
      %80 = sbr.rel (%p78) target = $region41
    $region40: #{tpu_custom_call.1} parent=1 // pred_region
      %81 = vst [vmem:[#allocation2] sm:$0xff] 0.0
      %82 = vst [vmem:[#allocation2 + $0x8] sm:$0xff] 0.0
      %83 = vst [vmem:[#allocation3] sm:$0xff] 0.0
      %84 = vst [vmem:[#allocation3 + $0x8] sm:$0xff] 0.0
    $region41: #{tpu_custom_call.1} parent=1 // pred_fallthru
      _
    %v85 = vld [vmem:[#allocation4] sm:$0xf]
    %v86 = vld [vmem:[#allocation4 + $0x4] sm:$0xf]
    %v87 = vld [vmem:[#allocation2] sm:$0xff]
    %v88 = vld [vmem:[#allocation2 + $0x8] sm:$0xff]
    %v89 = vld [vmem:[#allocation7] sm:$0xf]
    %v90 = vld [vmem:[#allocation7 + $0x4] sm:$0xf]
    %v91 = vld [vmem:[#allocation7 + $0x8] sm:$0xf]
    %v92 = vld [vmem:[#allocation7 + $0xc] sm:$0xf]
    %v93 = vld [vmem:[#allocation7 + $0x10] sm:$0xf]
    %v94 = vld [vmem:[#allocation7 + $0x14] sm:$0xf]
    %v95 = vld [vmem:[#allocation7 + $0x18] sm:$0xf]
    %v96 = vld [vmem:[#allocation7 + $0x1c] sm:$0xf]
    %v97 = vld [vmem:[#allocation7 + $0x20] sm:$0xf]
    %v98 = vld [vmem:[#allocation7 + $0x24] sm:$0xf]
    %v99 = vld [vmem:[#allocation7 + $0x28] sm:$0xf]
    %v100 = vld [vmem:[#allocation7 + $0x2c] sm:$0xf]
    %v101 = vld [vmem:[#allocation7 + $0x30] sm:$0xf]
    %v102 = vld [vmem:[#allocation7 + $0x34] sm:$0xf]
    %v103 = vld [vmem:[#allocation7 + $0x38] sm:$0xf]
    %v104 = vld [vmem:[#allocation7 + $0x3c] sm:$0xf]
    %v107 = vunpack.c.l.b16 %v85
    %v108 = vunpack.c.l.b16 %v86
    %v109 = vpack.c.b16 %v108, %v107
    %v127 = vunpack.c.l.b16 %v89
    %v128 = vunpack.c.l.b16 %v90
    %v129 = vunpack.c.l.b16 %v91
    %v130 = vunpack.c.l.b16 %v92
    %v131 = vunpack.c.l.b16 %v93
    %v132 = vunpack.c.l.b16 %v94
    %v133 = vunpack.c.l.b16 %v95
    %v134 = vunpack.c.l.b16 %v96
    %v135 = vunpack.c.l.b16 %v97
    %v136 = vunpack.c.l.b16 %v98
    %v137 = vunpack.c.l.b16 %v99
    %v138 = vunpack.c.l.b16 %v100
    %v139 = vunpack.c.l.b16 %v101
    %v140 = vunpack.c.l.b16 %v102
    %v141 = vunpack.c.l.b16 %v103
    %v142 = vunpack.c.l.b16 %v104
    %v143 = vpack.c.b16 %v128, %v127
    %v144 = vpack.c.b16 %v130, %v129
    %v145 = vpack.c.b16 %v132, %v131
    %v146 = vpack.c.b16 %v134, %v133
    %v147 = vpack.c.b16 %v136, %v135
    %v148 = vpack.c.b16 %v138, %v137
    %v149 = vpack.c.b16 %v140, %v139
    %v150 = vpack.c.b16 %v142, %v141
    %159 = vmatprep.subr.bf16.mxu0 0
    %160 = vmatpush1.bf16.msra.mxu0 %v150
    %161 = vmatprep.subr.bf16.mxu0 0
    %162 = vmatpush1.bf16.msra.mxu0 %v149
    %163 = vmatprep.subr.bf16.mxu0 0
    %164 = vmatpush1.bf16.msra.mxu0 %v148
    %165 = vmatprep.subr.bf16.mxu0 0
    %166 = vmatpush1.bf16.msra.mxu0 %v147
    %167 = vmatprep.subr.bf16.mxu0 0
    %168 = vmatpush1.bf16.msra.mxu0 %v146
    %169 = vmatprep.subr.bf16.mxu0 0
    %170 = vmatpush1.bf16.msra.mxu0 %v145
    %171 = vmatprep.subr.bf16.mxu0 0
    %172 = vmatpush1.bf16.msra.mxu0 %v144
    %173 = vmatprep.subr.bf16.mxu0 0
    %174 = vmatpush1.bf16.msra.mxu0 %v143
    %175 = vmatprep.subr.bf16.mxu0 0
    %176 = vmatpush2.bf16.msra.mxu0 0
    %177 = vmatprep.subr.bf16.mxu0 0
    %178 = vmatpush2.bf16.msra.mxu0 0
    %179 = vmatprep.subr.bf16.mxu0 0
    %180 = vmatpush2.bf16.msra.mxu0 0
    %181 = vmatprep.subr.bf16.mxu0 0
    %182 = vmatpush2.bf16.msra.mxu0 0
    %183 = vmatprep.subr.bf16.mxu0 0
    %184 = vmatpush2.bf16.msra.mxu0 0
    %185 = vmatprep.subr.bf16.mxu0 0
    %186 = vmatpush2.bf16.msra.mxu0 0
    %187 = vmatprep.subr.bf16.mxu0 0
    %188 = vmatpush2.bf16.msra.mxu0 0
    %189 = vmatprep.subr.bf16.mxu0 0
    %190 = vmatpush2.bf16.msra.mxu0 0
    %191 = vmatprep.mubr.bf16.mxu0 0
    %192 = vmatmul.mubr.bf16.gmra.mxu0 %v109
    %v193 = vpop.f32.mrf.mxu0
    %v194 = vadd.f32 0.0, %v193
    %v195 = vpop.f32.mrf.mxu0
    %v196 = vpop.f32.mrf.mxu0
    %v197 = vadd.f32 0.0, %v196
    %v198 = vpop.f32.mrf.mxu0
    %199 = vdwg.mxu0
    %v200 = vadd.f32 %v87, %v194
    %v201 = vadd.f32 %v88, %v197
    %202 = vst [vmem:[#allocation2] sm:$0xff] %v200
    %203 = vst [vmem:[#allocation2 + $0x8] sm:$0xff] %v201
    %s204 = smul.u32 0, 128
    %s205 = sshra.s32 %s204, 3
    %s206 = sand.u32 %s204, 7
    %s207 = smul.addr %s205, 4
    %s208 = scalar_lea.vmem [#allocation9], %s207
    %v209 = vld [vmem:[%s208] sm:$0xf]
    %v210 = vld [vmem:[%s208 + $0x4] sm:$0xf]
    %v211 = vld [vmem:[%s208 + $0x8] sm:$0xf]
    %v212 = vld [vmem:[%s208 + $0xc] sm:$0xf]
    %v213 = vld [vmem:[%s208 + $0x10] sm:$0xf]
    %v214 = vld [vmem:[%s208 + $0x14] sm:$0xf]
    %v215 = vld [vmem:[%s208 + $0x18] sm:$0xf]
    %v216 = vld [vmem:[%s208 + $0x1c] sm:$0xf]
    %v217 = vld [vmem:[%s208 + $0x20] sm:$0xf]
    %v218 = vld [vmem:[%s208 + $0x24] sm:$0xf]
    %v219 = vld [vmem:[%s208 + $0x28] sm:$0xf]
    %v220 = vld [vmem:[%s208 + $0x2c] sm:$0xf]
    %v221 = vld [vmem:[%s208 + $0x30] sm:$0xf]
    %v222 = vld [vmem:[%s208 + $0x34] sm:$0xf]
    %v223 = vld [vmem:[%s208 + $0x38] sm:$0xf]
    %v224 = vld [vmem:[%s208 + $0x3c] sm:$0xf]
    %v225 = vld [vmem:[#allocation3] sm:$0xff]
    %v226 = vld [vmem:[#allocation3 + $0x8] sm:$0xff]
    %v243 = vunpack.c.l.b16 %v209
    %v244 = vunpack.c.l.b16 %v210
    %v245 = vunpack.c.l.b16 %v211
    %v246 = vunpack.c.l.b16 %v212
    %v247 = vunpack.c.l.b16 %v213
    %v248 = vunpack.c.l.b16 %v214
    %v249 = vunpack.c.l.b16 %v215
    %v250 = vunpack.c.l.b16 %v216
    %v251 = vunpack.c.l.b16 %v217
    %v252 = vunpack.c.l.b16 %v218
    %v253 = vunpack.c.l.b16 %v219
    %v254 = vunpack.c.l.b16 %v220
    %v255 = vunpack.c.l.b16 %v221
    %v256 = vunpack.c.l.b16 %v222
    %v257 = vunpack.c.l.b16 %v223
    %v258 = vunpack.c.l.b16 %v224
    %v259 = vpack.c.b16 %v244, %v243
    %v260 = vpack.c.b16 %v246, %v245
    %v261 = vpack.c.b16 %v248, %v247
    %v262 = vpack.c.b16 %v250, %v249
    %v263 = vpack.c.b16 %v252, %v251
    %v264 = vpack.c.b16 %v254, %v253
    %v265 = vpack.c.b16 %v256, %v255
    %v266 = vpack.c.b16 %v258, %v257
    %275 = vmatprep.subr.bf16.mxu0 0
    %276 = vmatpush1.bf16.msra.mxu0 %v266
    %277 = vmatprep.subr.bf16.mxu0 0
    %278 = vmatpush1.bf16.msra.mxu0 %v265
    %279 = vmatprep.subr.bf16.mxu0 0
    %280 = vmatpush1.bf16.msra.mxu0 %v264
    %281 = vmatprep.subr.bf16.mxu0 0
    %282 = vmatpush1.bf16.msra.mxu0 %v263
    %283 = vmatprep.subr.bf16.mxu0 0
    %284 = vmatpush1.bf16.msra.mxu0 %v262
    %285 = vmatprep.subr.bf16.mxu0 0
    %286 = vmatpush1.bf16.msra.mxu0 %v261
    %287 = vmatprep.subr.bf16.mxu0 0
    %288 = vmatpush1.bf16.msra.mxu0 %v260
    %289 = vmatprep.subr.bf16.mxu0 0
    %290 = vmatpush1.bf16.msra.mxu0 %v259
    %291 = vmatprep.subr.bf16.mxu0 0
    %292 = vmatpush2.bf16.msra.mxu0 0
    %293 = vmatprep.subr.bf16.mxu0 0
    %294 = vmatpush2.bf16.msra.mxu0 0
    %295 = vmatprep.subr.bf16.mxu0 0
    %296 = vmatpush2.bf16.msra.mxu0 0
    %297 = vmatprep.subr.bf16.mxu0 0
    %298 = vmatpush2.bf16.msra.mxu0 0
    %299 = vmatprep.subr.bf16.mxu0 0
    %300 = vmatpush2.bf16.msra.mxu0 0
    %301 = vmatprep.subr.bf16.mxu0 0
    %302 = vmatpush2.bf16.msra.mxu0 0
    %303 = vmatprep.subr.bf16.mxu0 0
    %304 = vmatpush2.bf16.msra.mxu0 0
    %305 = vmatprep.subr.bf16.mxu0 0
    %306 = vmatpush2.bf16.msra.mxu0 0
    %307 = vmatprep.mubr.bf16.mxu0 0
    %308 = vmatmul.mubr.bf16.gmra.mxu0 %v109
    %v309 = vpop.f32.mrf.mxu0
    %v310 = vadd.f32 0.0, %v309
    %v311 = vpop.f32.mrf.mxu0
    %v312 = vpop.f32.mrf.mxu0
    %v313 = vadd.f32 0.0, %v312
    %v314 = vpop.f32.mrf.mxu0
    %315 = vdwg.mxu0
    %v316 = vadd.f32 %v225, %v310
    %v317 = vadd.f32 %v226, %v313
    %318 = vst [vmem:[#allocation3] sm:$0xff] %v316
    %319 = vst [vmem:[#allocation3 + $0x8] sm:$0xff] %v317
    // Predicated region
    $region42: #{tpu_custom_call.1} parent=1 // pred_check
      %p320 = pneg %p77
    $region43: #{tpu_custom_call.1} parent=1 // pred_check_branch
      %322 = sbr.rel (%p320) target = $region45
    $region44: #{tpu_custom_call.1} parent=1 // pred_region
      %v323 = vld [vmem:[#allocation3] sm:$0xff]
      %v324 = vld [vmem:[#allocation3 + $0x8] sm:$0xff]
      %v325 = vld [vmem:[#allocation10] sm:$0xf]
      %v326 = vld [vmem:[#allocation10 + $0x4] sm:$0xf]
      %v327 = vld [vmem:[#allocation10 + $0x8] sm:$0xf]
      %v328 = vld [vmem:[#allocation10 + $0xc] sm:$0xf]
      %v329 = vld [vmem:[#allocation10 + $0x10] sm:$0xf]
      %v330 = vld [vmem:[#allocation10 + $0x14] sm:$0xf]
      %v331 = vld [vmem:[#allocation10 + $0x18] sm:$0xf]
      %v332 = vld [vmem:[#allocation10 + $0x1c] sm:$0xf]
      %v333 = vld [vmem:[#allocation10 + $0x20] sm:$0xf]
      %v334 = vld [vmem:[#allocation10 + $0x24] sm:$0xf]
      %v335 = vld [vmem:[#allocation10 + $0x28] sm:$0xf]
      %v336 = vld [vmem:[#allocation10 + $0x2c] sm:$0xf]
      %v337 = vld [vmem:[#allocation10 + $0x30] sm:$0xf]
      %v338 = vld [vmem:[#allocation10 + $0x34] sm:$0xf]
      %v339 = vld [vmem:[#allocation10 + $0x38] sm:$0xf]
      %v340 = vld [vmem:[#allocation10 + $0x3c] sm:$0xf]
      %v341 = vunpack.c.l.bf16 %v325
      %v342 = vunpack.c.l.bf16 %v326
      %v343 = vunpack.c.l.bf16 %v327
      %v344 = vunpack.c.l.bf16 %v328
      %v345 = vunpack.c.l.bf16 %v329
      %v346 = vunpack.c.l.bf16 %v330
      %v347 = vunpack.c.l.bf16 %v331
      %v348 = vunpack.c.l.bf16 %v332
      %v349 = vunpack.c.l.bf16 %v333
      %v350 = vunpack.c.l.bf16 %v334
      %v351 = vunpack.c.l.bf16 %v335
      %v352 = vunpack.c.l.bf16 %v336
      %v353 = vunpack.c.l.bf16 %v337
      %v354 = vunpack.c.l.bf16 %v338
      %v355 = vunpack.c.l.bf16 %v339
      %v356 = vunpack.c.l.bf16 %v340
      %357 = vmatprep.subr.mxu0 0.0
      %358 = vmatpush1.msra.mxu0 %v356
      %359 = vmatprep.subr.mxu0 0.0
      %360 = vmatpush1.msra.mxu0 %v355
      %361 = vmatprep.subr.mxu0 0.0
      %362 = vmatpush1.msra.mxu0 %v354
      %363 = vmatprep.subr.mxu0 0.0
      %364 = vmatpush1.msra.mxu0 %v353
      %365 = vmatprep.subr.mxu0 0.0
      %366 = vmatpush1.msra.mxu0 %v352
      %367 = vmatprep.subr.mxu0 0.0
      %368 = vmatpush1.msra.mxu0 %v351
      %369 = vmatprep.subr.mxu0 0.0
      %370 = vmatpush1.msra.mxu0 %v350
      %371 = vmatprep.subr.mxu0 0.0
      %372 = vmatpush1.msra.mxu0 %v349
      %373 = vmatprep.subr.mxu0 0.0
      %374 = vmatpush1.msra.mxu0 %v348
      %375 = vmatprep.subr.mxu0 0.0
      %376 = vmatpush1.msra.mxu0 %v347
      %377 = vmatprep.subr.mxu0 0.0
      %378 = vmatpush1.msra.mxu0 %v346
      %379 = vmatprep.subr.mxu0 0.0
      %380 = vmatpush1.msra.mxu0 %v345
      %381 = vmatprep.subr.mxu0 0.0
      %382 = vmatpush1.msra.mxu0 %v344
      %383 = vmatprep.subr.mxu0 0.0
      %384 = vmatpush1.msra.mxu0 %v343
      %385 = vmatprep.subr.mxu0 0.0
      %386 = vmatpush1.msra.mxu0 %v342
      %387 = vmatprep.subr.mxu0 0.0
      %388 = vmatpush1.msra.mxu0 %v341
      %389 = vmatprep.subr.mxu0 0.0
      %390 = vmatpush2.msra.mxu0 0.0
      %391 = vmatprep.subr.mxu0 0.0
      %392 = vmatpush2.msra.mxu0 0.0
      %393 = vmatprep.subr.mxu0 0.0
      %394 = vmatpush2.msra.mxu0 0.0
      %395 = vmatprep.subr.mxu0 0.0
      %396 = vmatpush2.msra.mxu0 0.0
      %397 = vmatprep.subr.mxu0 0.0
      %398 = vmatpush2.msra.mxu0 0.0
      %399 = vmatprep.subr.mxu0 0.0
      %400 = vmatpush2.msra.mxu0 0.0
      %401 = vmatprep.subr.mxu0 0.0
      %402 = vmatpush2.msra.mxu0 0.0
      %403 = vmatprep.subr.mxu0 0.0
      %404 = vmatpush2.msra.mxu0 0.0
      %405 = vmatprep.subr.mxu0 0.0
      %406 = vmatpush2.msra.mxu0 0.0
      %407 = vmatprep.subr.mxu0 0.0
      %408 = vmatpush2.msra.mxu0 0.0
      %409 = vmatprep.subr.mxu0 0.0
      %410 = vmatpush2.msra.mxu0 0.0
      %411 = vmatprep.subr.mxu0 0.0
      %412 = vmatpush2.msra.mxu0 0.0
      %413 = vmatprep.subr.mxu0 0.0
      %414 = vmatpush2.msra.mxu0 0.0
      %415 = vmatprep.subr.mxu0 0.0
      %416 = vmatpush2.msra.mxu0 0.0
      %417 = vmatprep.subr.mxu0 0.0
      %418 = vmatpush2.msra.mxu0 0.0
      %419 = vmatprep.subr.mxu0 0.0
      %420 = vmatpush2.msra.mxu0 0.0
      %421 = vmatprep.mubr.f32.mxu0 0.0
      %422 = vmatmul.mubr.f32.gmra.mxu0 %v323
      %v423 = vpop.f32.mrf.mxu0
      %v424 = vadd.f32 0.0, %v423
      %v425 = vpop.f32.mrf.mxu0
      %426 = vmatprep.mubr.f32.mxu0 0.0
      %427 = vmatmul.mubr.f32.gmra.mxu0 %v324
      %v428 = vpop.f32.mrf.mxu0
      %v429 = vadd.f32 0.0, %v428
      %v430 = vpop.f32.mrf.mxu0
      %431 = vdwg.mxu0
      %v432 = vld [vmem:[#allocation2] sm:$0xff]
      %v433 = vld [vmem:[#allocation2 + $0x8] sm:$0xff]
      %v434 = vadd.f32 %v432, %v424
      %v435 = vadd.f32 %v433, %v429
      %v436 = vld [vmem:[%s2] sm:$0x1]
      %v438 = vlaneseq
      %v439 = vshrl.u32 %v438, 7
      %v440 = vsub.s32 0, %v439
      %v441 = vrot.slane %v436, %v440
      %v443 = vadd.f32 %v434, %v441
      %v444 = vadd.f32 %v435, %v441
      %445 = vst [vmem:[#allocation12] sm:$0xff] %v443
      %446 = vst [vmem:[#allocation12 + $0x8] sm:$0xff] %v444
    $region45: #{tpu_custom_call.1} parent=1 // pred_fallthru
      _
    // Predicated region
    $region46: #{tpu_custom_call.1} parent=1 // pred_check
      _
    $region47: #{tpu_custom_call.1} parent=1 // pred_check_branch
      %448 = sbr.rel (0) target = $region49
    $region48: #{tpu_custom_call.1} parent=1 // pred_region
      %s450 = ssub.s32 256, 256
      %451 = vsyncadd [#allocation6], %s450
      %s452 = sshll.u32 [#allocation12], 4
      %s453 = int_to_ptr.vmem [resolvable:$true] %s452
      %458 = dma.vmem_to_hbm [thread:$0]  %s453, 256, %s5, [#allocation6], 128, 128, 8
    $region49: #{tpu_custom_call.1} parent=1 // pred_fallthru
      _
    // Predicated region
    $region50: #{tpu_custom_call.1} parent=1 // pred_check
      _
    $region51: #{tpu_custom_call.1} parent=1 // pred_check_branch
      %460 = sbr.rel (0) target = $region53
    $region52: #{tpu_custom_call.1} parent=1 // pred_region
      %461 = dma.done [#allocation6], 256
    $region53: #{tpu_custom_call.1} parent=1 // pred_fallthru
      _
    %462 = vsyncpa [#allocation5], 1
    %463 = vsyncpa [#allocation8], 1
    %464 = vsyncpa [#allocation11], 1
    %465 = vsyncpa [#allocation6], 1

</llo_original>
